<compile_context>
chip_gen: v5e
topology: v5e:2x2
jax: 0.10.0
libtpu: 0.0.40
codegen_flags: <defaults>
</compile_context>

<pallas_src>
import functools

import jax
import jax.numpy as jnp
from jax import lax
from jax.experimental import pallas as pl
from jax.experimental.pallas import tpu as pltpu

EPS = 1e-6


def _choose_feature_tile(n_rows, f, itemsize, max_tile=None):
    """Pick a feature-axis tile width (multiple of 128, ~2 MiB per input block)."""
    target_bytes = 2 * 1024 * 1024
    fw = target_bytes // max(1, n_rows * itemsize)
    if max_tile is not None:
        fw = min(fw, max_tile)
    if fw >= f:
        # Single full-extent block: no tiling, no masking needed (full array dims
        # are always a legal block shape regardless of 128 divisibility).
        return f, False
    fw = max(128, (fw // 128) * 128)
    return fw, (f % fw != 0)


def _iou_sums_kernel(p_ref, t_ref, inter_ref, union_ref, *,
                     fw, total_features, chunks_per_group, needs_mask):
    k = pl.program_id(1)  # reduction axis (last grid axis, "arbitrary")

    @pl.when(k == 0)
    def _():
        inter_ref[...] = jnp.zeros_like(inter_ref)
        union_ref[...] = jnp.zeros_like(union_ref)

    p = p_ref[...].astype(jnp.float32)
    t = t_ref[...].astype(jnp.float32)

    if needs_mask:
        # Global feature chunk handled by this step; zero out lanes past the
        # (unpadded) feature extent.  Select (not multiply) -> garbage-safe.
        c = pl.program_id(0) * chunks_per_group + k
        col = c * fw + lax.broadcasted_iota(jnp.int32, p.shape, 1)
        keep = col < total_features
        p = jnp.where(keep, p, 0.0)
        t = jnp.where(keep, t, 0.0)

    pt = p * t
    inter_ref[...] += jnp.sum(pt, axis=-1, keepdims=True)[None]
    union_ref[...] += jnp.sum(p + t - pt, axis=-1, keepdims=True)[None]


def iou_loss(predict, target, eps=EPS, reduction="mean", feature_tile=None):
    """Pallas implementation of IoULoss.forward (NCHW or any (N, ...) inputs)."""
    assert predict.shape == target.shape
    n = predict.shape[0]
    p2 = predict.reshape(n, -1)   # free row-major reshape, no data movement
    t2 = target.reshape(n, -1)
    f = p2.shape[1]

    itemsize = max(jnp.dtype(p2.dtype).itemsize, jnp.dtype(t2.dtype).itemsize)
    fw, needs_mask = _choose_feature_tile(n, f, itemsize, max_tile=feature_tile)

    n_chunks = -(-f // fw)  # cdiv
    # Split the feature chunks into 2 independent groups when it divides evenly:
    # the leading "parallel" axis lets v7x's two TensorCores each own a group.
    p_groups = 2 if (n_chunks >= 2 and n_chunks % 2 == 0) else 1
    chunks_per_group = n_chunks // p_groups

    kernel = functools.partial(
        _iou_sums_kernel,
        fw=fw,
        total_features=f,
        chunks_per_group=chunks_per_group,
        needs_mask=needs_mask,
    )

    inter_p, union_p = pl.pallas_call(
        kernel,
        out_shape=(
            jax.ShapeDtypeStruct((p_groups, n, 1), jnp.float32),
            jax.ShapeDtypeStruct((p_groups, n, 1), jnp.float32),
        ),
        grid_spec=pltpu.PrefetchScalarGridSpec(
            num_scalar_prefetch=0,
            grid=(p_groups, chunks_per_group),
            in_specs=[
                pl.BlockSpec((n, fw), lambda p, k: (0, p * chunks_per_group + k)),
                pl.BlockSpec((n, fw), lambda p, k: (0, p * chunks_per_group + k)),
            ],
            out_specs=[
                pl.BlockSpec((1, n, 1), lambda p, k: (p, 0, 0)),
                pl.BlockSpec((1, n, 1), lambda p, k: (p, 0, 0)),
            ],
        ),
        compiler_params=pltpu.CompilerParams(
            dimension_semantics=("parallel", "arbitrary")
        ),
    )(p2, t2)

    # Tiny final reductions in plain JAX: sum the per-group partials, 1/union, mean.
    inter = jnp.sum(inter_p[:, :, 0], axis=0)
    union = jnp.sum(union_p[:, :, 0], axis=0) + jnp.float32(eps)
    iou = inter / union
    if reduction == "none":
        return 1.0 - iou
    # reduction == 'mean' (matches PyTorch: sum / nelement of intersect)
    return 1.0 - jnp.sum(iou) / iou.size


def _iou_loss_ref(predict, target, eps=EPS):
    # pure-JAX reference for sanity checking
    n = predict.shape[0]
    p = predict.reshape(n, -1).astype(jnp.float32)
    t = target.reshape(n, -1).astype(jnp.float32)
    inter = jnp.sum(p * t, axis=1)
    union = jnp.sum(p + t - p * t, axis=1) + eps
    return 1.0 - jnp.mean(inter / union)


if __name__ == "__main__":
    key = jax.random.PRNGKey(0)
    k1, k2, k3, k4 = jax.random.split(key, 4)

    # Case 1: typical small NCHW inputs (batch=2, channels=4, 16x16 spatial).
    predict = jax.nn.sigmoid(jax.random.normal(k1, (2, 4, 16, 16), jnp.float32))
    target = (jax.random.uniform(k2, (2, 4, 16, 16)) > 0.5).astype(jnp.float32)
    loss = jax.block_until_ready(iou_loss(predict, target))
    ref = jax.block_until_ready(_iou_loss_ref(predict, target))
    assert jnp.allclose(loss, ref, rtol=1e-5, atol=1e-6), (loss, ref)

    # Case 2: exercise the multi-chunk + ragged-tail mask + 2-group (megacore)
    # code path with a small tile override (F = 4*9*9 = 324, tile = 256).
    predict2 = jax.nn.sigmoid(jax.random.normal(k3, (2, 4, 9, 9), jnp.float32))
    target2 = (jax.random.uniform(k4, (2, 4, 9, 9)) > 0.5).astype(jnp.float32)
    loss2 = jax.block_until_ready(iou_loss(predict2, target2, feature_tile=256))
    ref2 = jax.block_until_ready(_iou_loss_ref(predict2, target2))
    assert jnp.allclose(loss2, ref2, rtol=1e-5, atol=1e-6), (loss2, ref2)

    print("KERNEL_OK")
</pallas_src>

<mosaic_0001>
module attributes {stable_mosaic.version = 11 : i64} {
  func.func @_iou_sums_kernel(%arg0: i32, %arg1: i32, %arg2: memref<2x1024xf32, #tpu.memory_space<vmem>>, %arg3: memref<2x1024xf32, #tpu.memory_space<vmem>>, %arg4: memref<1x2x1xf32, #tpu.memory_space<vmem>>, %arg5: memref<1x2x1xf32, #tpu.memory_space<vmem>>) attributes {dimension_semantics = [#tpu.dimension_semantics<parallel>, #tpu.dimension_semantics<arbitrary>], iteration_bounds = array<i64: 1, 1>, scalar_prefetch = 0 : i64, scratch_operands = 0 : i64, tpu.core_type = #tpu.core_type<tc>, window_params = [{transform_indices = @transform_0, window_bounds = array<i64: 2, 1024>}, {transform_indices = @transform_1, window_bounds = array<i64: 2, 1024>}, {transform_indices = @transform_2, window_bounds = array<i64: 1, 2, 1>}, {transform_indices = @transform_3, window_bounds = array<i64: 1, 2, 1>}]} {
    %c0_i32 = arith.constant 0 : i32
    %0 = arith.cmpi eq, %arg1, %c0_i32 : i32
    %1 = arith.extui %0 : i1 to i32
    %c0_i32_0 = arith.constant 0 : i32
    %2 = arith.cmpi ne, %1, %c0_i32_0 : i32
    scf.if %2 {
      %cst_17 = arith.constant 0.000000e+00 : f32
      %20 = vector.broadcast %cst_17 : f32 to vector<1x2x1xf32>
      %c0_18 = arith.constant 0 : index
      %c0_19 = arith.constant 0 : index
      %c0_20 = arith.constant 0 : index
      %21 = vector.load %arg4[%c0_18, %c0_19, %c0_20] : memref<1x2x1xf32, #tpu.memory_space<vmem>>, vector<1x2x1xf32>
      tpu.vector_store %arg4[%c0_18, %c0_19, %c0_20], %20 {strides = array<i32>} : memref<1x2x1xf32, #tpu.memory_space<vmem>>, vector<1x2x1xf32>,
      %cst_21 = arith.constant 0.000000e+00 : f32
      %22 = vector.broadcast %cst_21 : f32 to vector<1x2x1xf32>
      %c0_22 = arith.constant 0 : index
      %c0_23 = arith.constant 0 : index
      %c0_24 = arith.constant 0 : index
      %23 = vector.load %arg5[%c0_22, %c0_23, %c0_24] : memref<1x2x1xf32, #tpu.memory_space<vmem>>, vector<1x2x1xf32>
      tpu.vector_store %arg5[%c0_22, %c0_23, %c0_24], %22 {strides = array<i32>} : memref<1x2x1xf32, #tpu.memory_space<vmem>>, vector<1x2x1xf32>,
    } else {
    }
    %c0 = arith.constant 0 : index
    %c0_1 = arith.constant 0 : index
    %3 = vector.load %arg2[%c0, %c0_1] : memref<2x1024xf32, #tpu.memory_space<vmem>>, vector<2x1024xf32>
    %c0_2 = arith.constant 0 : index
    %c0_3 = arith.constant 0 : index
    %4 = vector.load %arg3[%c0_2, %c0_3] : memref<2x1024xf32, #tpu.memory_space<vmem>>, vector<2x1024xf32>
    %5 = arith.mulf %3, %4 : vector<2x1024xf32>
    %c0_4 = arith.constant 0 : index
    %c0_5 = arith.constant 0 : index
    %c0_6 = arith.constant 0 : index
    %6 = vector.load %arg4[%c0_4, %c0_5, %c0_6] : memref<1x2x1xf32, #tpu.memory_space<vmem>>, vector<1x2x1xf32>
    %cst = arith.constant dense<0.000000e+00> : vector<2xf32>
    %7 = vector.multi_reduction <add>, %5, %cst [1] : vector<2x1024xf32> to vector<2xf32>
    %8 = vector.shape_cast %7 : vector<2xf32> to vector<2x1xf32>
    %9 = vector.shape_cast %8 : vector<2x1xf32> to vector<1x2x1xf32>
    %10 = arith.addf %6, %9 : vector<1x2x1xf32>
    %c0_7 = arith.constant 0 : index
    %c0_8 = arith.constant 0 : index
    %c0_9 = arith.constant 0 : index
    %11 = vector.load %arg4[%c0_7, %c0_8, %c0_9] : memref<1x2x1xf32, #tpu.memory_space<vmem>>, vector<1x2x1xf32>
    tpu.vector_store %arg4[%c0_7, %c0_8, %c0_9], %10 {strides = array<i32>} : memref<1x2x1xf32, #tpu.memory_space<vmem>>, vector<1x2x1xf32>,
    %c0_10 = arith.constant 0 : index
    %c0_11 = arith.constant 0 : index
    %c0_12 = arith.constant 0 : index
    %12 = vector.load %arg5[%c0_10, %c0_11, %c0_12] : memref<1x2x1xf32, #tpu.memory_space<vmem>>, vector<1x2x1xf32>
    %13 = arith.addf %3, %4 : vector<2x1024xf32>
    %14 = arith.subf %13, %5 : vector<2x1024xf32>
    %cst_13 = arith.constant dense<0.000000e+00> : vector<2xf32>
    %15 = vector.multi_reduction <add>, %14, %cst_13 [1] : vector<2x1024xf32> to vector<2xf32>
    %16 = vector.shape_cast %15 : vector<2xf32> to vector<2x1xf32>
    %17 = vector.shape_cast %16 : vector<2x1xf32> to vector<1x2x1xf32>
    %18 = arith.addf %12, %17 : vector<1x2x1xf32>
    %c0_14 = arith.constant 0 : index
    %c0_15 = arith.constant 0 : index
    %c0_16 = arith.constant 0 : index
    %19 = vector.load %arg5[%c0_14, %c0_15, %c0_16] : memref<1x2x1xf32, #tpu.memory_space<vmem>>, vector<1x2x1xf32>
    tpu.vector_store %arg5[%c0_14, %c0_15, %c0_16], %18 {strides = array<i32>} : memref<1x2x1xf32, #tpu.memory_space<vmem>>, vector<1x2x1xf32>,
    return
  }
  func.func @transform_0(%arg0: i32, %arg1: i32) -> (i32, i32) {
    %c1_i32 = arith.constant 1 : i32
    %0 = arith.muli %arg0, %c1_i32 : i32
    %1 = arith.addi %0, %arg1 : i32
    %c0_i32 = arith.constant 0 : i32
    %c0_i32_0 = arith.constant 0 : i32
    return %c0_i32, %1 : i32, i32
  }
  func.func @transform_1(%arg0: i32, %arg1: i32) -> (i32, i32) {
    %c1_i32 = arith.constant 1 : i32
    %0 = arith.muli %arg0, %c1_i32 : i32
    %1 = arith.addi %0, %arg1 : i32
    %c0_i32 = arith.constant 0 : i32
    %c0_i32_0 = arith.constant 0 : i32
    return %c0_i32, %1 : i32, i32
  }
  func.func @transform_2(%arg0: i32, %arg1: i32) -> (i32, i32, i32) {
    %c0_i32 = arith.constant 0 : i32
    %c0_i32_0 = arith.constant 0 : i32
    %c0_i32_1 = arith.constant 0 : i32
    return %arg0, %c0_i32, %c0_i32_0 : i32, i32, i32
  }
  func.func @transform_3(%arg0: i32, %arg1: i32) -> (i32, i32, i32) {
    %c0_i32 = arith.constant 0 : i32
    %c0_i32_0 = arith.constant 0 : i32
    %c0_i32_1 = arith.constant 0 : i32
    return %arg0, %c0_i32, %c0_i32_0 : i32, i32, i32
  }
}

</mosaic_0001>

<llo_original>
// kernel: tpu_custom_call.1
$region0: #{tpu_custom_call.1}
  #allocation0 [shape = 'u32[]', space=smem, size = 0x4, offset = 0x4, fixed_abs, tag = 'smem constant byte address 0x4 - core index']
  #allocation1 [shape = 'u32[72,128]{1,0:T(1,128)}', space=vmem, size = 0x9000, scoped, tag = 'internal scratch']
  %s0 = inlined_call_operand.hbm [shape: f32[2,1024], index: 0, kind: input, shape index: {}]
  %s1 = inlined_call_operand.hbm [shape: f32[2,1024], index: 1, kind: input, shape index: {}]
  %s2 = inlined_call_operand.vmem [shape: f32[1,2,1], index: 2, kind: output, shape index: {0}]
  %s3 = inlined_call_operand.vmem [shape: f32[1,2,1], index: 3, kind: output, shape index: {1}]
  %4 = xla_tuple %s2, %s3
  %s5 = sld [smem:[#allocation0]]
  $region38: #{tpu_custom_call.1} parent=0
    _
  %s7 = ssub.s32 1, %s5
  %s8 = scalar_select 0, %s7, %s5
  $region1: #{tpu_custom_call.1} parent=0
    #allocation2 [shape = 'u8[8192]{0}', space=vmem, size = 0x2000, scoped, tag = 'input window, operand 0, single buffered']
    #allocation3 [shape = 's32[1]{0}', space=sflag, size = 0x4, scoped, tag = 'scoped memory for tpu_custom_call.1']
    #allocation4 [shape = 'u8[8192]{0}', space=vmem, size = 0x2000, scoped, tag = 'input window, operand 1, single buffered']
    #allocation5 [shape = 's32[1]{0}', space=sflag, size = 0x4, scoped, tag = 'scoped memory for tpu_custom_call.1']
    %9 = vsyncpa [#allocation3], 0
    %10 = vsyncpa [#allocation5], 0
    // Predicated region
    $region2: #{tpu_custom_call.1} parent=1 // pred_check
      _
    $region3: #{tpu_custom_call.1} parent=1 // pred_check_branch
      %12 = sbr.rel (0) target = $region5
    $region4: #{tpu_custom_call.1} parent=1 // pred_region
      %s13 = sadd.s32 0, 0
      %s14 = smul.u32 8, %s13
      %16 = vsyncadd [#allocation3], 0
      %s17 = smul.addr %s14, 2
      %s18 = scalar_lea.hbm %s0, %s17
      %s20 = sshll.u32 %s18, 4
      %s21 = int_to_ptr.hbm [resolvable:$true] %s20
      %s22 = sshll.u32 [#allocation2], 4
      %s23 = int_to_ptr.vmem [resolvable:$true] %s22
      %25 = dma.hbm_to_vmem [thread:$0]  %s21, 256, %s23, [#allocation3]
    $region5: #{tpu_custom_call.1} parent=1 // pred_fallthru
      _
    // Predicated region
    $region6: #{tpu_custom_call.1} parent=1 // pred_check
      _
    $region7: #{tpu_custom_call.1} parent=1 // pred_check_branch
      %27 = sbr.rel (0) target = $region9
    $region8: #{tpu_custom_call.1} parent=1 // pred_region
      %s28 = sadd.s32 0, 0
      %s29 = smul.u32 8, %s28
      %31 = vsyncadd [#allocation5], 0
      %s32 = smul.addr %s29, 2
      %s33 = scalar_lea.hbm %s1, %s32
      %s35 = sshll.u32 %s33, 4
      %s36 = int_to_ptr.hbm [resolvable:$true] %s35
      %s37 = sshll.u32 [#allocation4], 4
      %s38 = int_to_ptr.vmem [resolvable:$true] %s37
      %40 = dma.hbm_to_vmem [thread:$0]  %s36, 256, %s38, [#allocation5]
    $region9: #{tpu_custom_call.1} parent=1 // pred_fallthru
      _
    // Predicated region
    $region10: #{tpu_custom_call.1} parent=1 // pred_check
      _
    $region11: #{tpu_custom_call.1} parent=1 // pred_check_branch
      %42 = sbr.rel (0) target = $region13
    $region12: #{tpu_custom_call.1} parent=1 // pred_region
      %44 = dma.done [#allocation3], 256
    $region13: #{tpu_custom_call.1} parent=1 // pred_fallthru
      _
    // Predicated region
    $region14: #{tpu_custom_call.1} parent=1 // pred_check
      _
    $region15: #{tpu_custom_call.1} parent=1 // pred_check_branch
      %46 = sbr.rel (0) target = $region17
    $region16: #{tpu_custom_call.1} parent=1 // pred_region
      %48 = dma.done [#allocation5], 256
    $region17: #{tpu_custom_call.1} parent=1 // pred_fallthru
      _
    %s49 = sadd.s32 0, 0
    %s50 = smul.u32 8, %s49
    %s51 = sadd.s32 0, 0
    %s52 = smul.u32 8, %s51
    %p53 = scmp.eq.s32.totalorder 0, 0
    // Predicated region
    $region18: #{tpu_custom_call.1} parent=1 // pred_check
      %p54 = pneg %p53
    $region19: #{tpu_custom_call.1} parent=1 // pred_check_branch
      %56 = sbr.rel (%p54) target = $region21
    $region20: #{tpu_custom_call.1} parent=1 // pred_region
      %vm57 = vcmask 1024
      %58 = vst.msk [vmem:[%s2] sm:$0x3] %vm57, 0.0
      %59 = vst.msk [vmem:[%s3] sm:$0x3] %vm57, 0.0
    $region21: #{tpu_custom_call.1} parent=1 // pred_fallthru
      _
    %v60 = vld [vmem:[#allocation2] sm:$0xff]
    %v61 = vld [vmem:[#allocation2 + $0x8] sm:$0xff]
    %v62 = vld [vmem:[#allocation4] sm:$0xff]
    %v63 = vld [vmem:[#allocation4 + $0x8] sm:$0xff]
    %v64 = vmul.f32 %v60, %v62
    %v65 = vmul.f32 %v61, %v63
    %v66 = vld [vmem:[%s2] sm:$0x3]
    %69 = vst [vmem:[#allocation1] ss:$4 sm:$0xff] %v64
    %s70 = scalar_lea.vmem [#allocation1], 32
    %71 = vst [vmem:[%s70] ss:$4 sm:$0xff] %v65
    %v72 = vld.sshfl [vmem:[#allocation1] sm:$0xff pattern:$0x73625140]
    %v73 = vld.sshfl [vmem:[#allocation1 + $0x8] sm:$0xff pattern:$0x73625140]
    %v74 = vld.sshfl [vmem:[#allocation1 + $0x10] sm:$0xff pattern:$0x73625140]
    %v75 = vld.sshfl [vmem:[#allocation1 + $0x18] sm:$0xff pattern:$0x73625140]
    %v76 = vld.sshfl [vmem:[#allocation1 + $0x20] sm:$0xff pattern:$0x73625140]
    %v77 = vld.sshfl [vmem:[#allocation1 + $0x28] sm:$0xff pattern:$0x73625140]
    %v78 = vld.sshfl [vmem:[#allocation1 + $0x30] sm:$0xff pattern:$0x73625140]
    %v79 = vld.sshfl [vmem:[#allocation1 + $0x38] sm:$0xff pattern:$0x73625140]
    %vm88 = vcmask 1041408
    %v89 = vsel %vm88, %v72, 0.0
    %v90 = vsel %vm88, %v73, 0.0
    %v91 = vadd.f32 %v89, %v90
    %v92 = vsel %vm88, %v74, 0.0
    %v93 = vadd.f32 %v91, %v92
    %v94 = vsel %vm88, %v75, 0.0
    %v95 = vadd.f32 %v93, %v94
    %v96 = vsel %vm88, %v76, 0.0
    %v97 = vadd.f32 %v95, %v96
    %v98 = vsel %vm88, %v77, 0.0
    %v99 = vadd.f32 %v97, %v98
    %v100 = vsel %vm88, %v78, 0.0
    %v101 = vadd.f32 %v99, %v100
    %v102 = vsel %vm88, %v79, 0.0
    %v103 = vadd.f32 %v101, %v102
    %104 = vadd.xlane.f32.xlu0 %v103
    %v105 = vpop.xlane.xlu0 %104
    %v106 = vadd.f32 %v66, %v105
    %vm107 = vcmask 1024
    %108 = vst.msk [vmem:[%s2] sm:$0x3] %vm107, %v106
    %v109 = vld [vmem:[%s3] sm:$0x3]
    %v110 = vadd.f32 %v60, %v62
    %v111 = vadd.f32 %v61, %v63
    %v112 = vsub.f32 %v110, %v64
    %v113 = vsub.f32 %v111, %v65
    %116 = vst [vmem:[#allocation1] ss:$4 sm:$0xff] %v112
    %s117 = scalar_lea.vmem [#allocation1], 32
    %118 = vst [vmem:[%s117] ss:$4 sm:$0xff] %v113
    %v119 = vld.sshfl [vmem:[#allocation1] sm:$0xff pattern:$0x73625140]
    %v120 = vld.sshfl [vmem:[#allocation1 + $0x8] sm:$0xff pattern:$0x73625140]
    %v121 = vld.sshfl [vmem:[#allocation1 + $0x10] sm:$0xff pattern:$0x73625140]
    %v122 = vld.sshfl [vmem:[#allocation1 + $0x18] sm:$0xff pattern:$0x73625140]
    %v123 = vld.sshfl [vmem:[#allocation1 + $0x20] sm:$0xff pattern:$0x73625140]
    %v124 = vld.sshfl [vmem:[#allocation1 + $0x28] sm:$0xff pattern:$0x73625140]
    %v125 = vld.sshfl [vmem:[#allocation1 + $0x30] sm:$0xff pattern:$0x73625140]
    %v126 = vld.sshfl [vmem:[#allocation1 + $0x38] sm:$0xff pattern:$0x73625140]
    %v135 = vsel %vm88, %v119, 0.0
    %v136 = vsel %vm88, %v120, 0.0
    %v137 = vadd.f32 %v135, %v136
    %v138 = vsel %vm88, %v121, 0.0
    %v139 = vadd.f32 %v137, %v138
    %v140 = vsel %vm88, %v122, 0.0
    %v141 = vadd.f32 %v139, %v140
    %v142 = vsel %vm88, %v123, 0.0
    %v143 = vadd.f32 %v141, %v142
    %v144 = vsel %vm88, %v124, 0.0
    %v145 = vadd.f32 %v143, %v144
    %v146 = vsel %vm88, %v125, 0.0
    %v147 = vadd.f32 %v145, %v146
    %v148 = vsel %vm88, %v126, 0.0
    %v149 = vadd.f32 %v147, %v148
    %150 = vadd.xlane.f32.xlu0 %v149
    %v151 = vpop.xlane.xlu0 %150
    %v152 = vadd.f32 %v109, %v151
    %153 = vst.msk [vmem:[%s3] sm:$0x3] %vm107, %v152
    // Predicated region
    $region22: #{tpu_custom_call.1} parent=1 // pred_check
      _
    $region23: #{tpu_custom_call.1} parent=1 // pred_check_branch
      %155 = sbr.rel (0) target = $region25
    $region24: #{tpu_custom_call.1} parent=1 // pred_region
      _
    $region25: #{tpu_custom_call.1} parent=1 // pred_fallthru
      _
    // Predicated region
    $region26: #{tpu_custom_call.1} parent=1 // pred_check
      _
    $region27: #{tpu_custom_call.1} parent=1 // pred_check_branch
      %157 = sbr.rel (0) target = $region29
    $region28: #{tpu_custom_call.1} parent=1 // pred_region
      _
    $region29: #{tpu_custom_call.1} parent=1 // pred_fallthru
      _
    // Predicated region
    $region30: #{tpu_custom_call.1} parent=1 // pred_check
      _
    $region31: #{tpu_custom_call.1} parent=1 // pred_check_branch
      %159 = sbr.rel (0) target = $region33
    $region32: #{tpu_custom_call.1} parent=1 // pred_region
      _
    $region33: #{tpu_custom_call.1} parent=1 // pred_fallthru
      _
    // Predicated region
    $region34: #{tpu_custom_call.1} parent=1 // pred_check
      _
    $region35: #{tpu_custom_call.1} parent=1 // pred_check_branch
      %161 = sbr.rel (0) target = $region37
    $region36: #{tpu_custom_call.1} parent=1 // pred_region
      _
    $region37: #{tpu_custom_call.1} parent=1 // pred_fallthru
      _
    %162 = vsyncpa [#allocation3], 1
    %163 = vsyncpa [#allocation5], 1

</llo_original>
